<compile_context>
chip_gen: v6e
topology: v6e:2x2x1
jax: 0.10.0
libtpu: 0.0.40
codegen_flags: <defaults>
</compile_context>

<pallas_src>
import functools

import jax
import jax.numpy as jnp
from jax.experimental import pallas as pl
from jax.experimental.pallas import tpu as pltpu


def _coupling_kernel(se_ref, a_ref, lp_ref,
                     w1_se_ref, w1_ac_ref, b1_ref, w2_ref, b2_ref,
                     out_ref, lp_out_ref, *, A):
    se = se_ref[...]                       # (TB, E)  native dtype -> MXU
    a = a_ref[...]                         # (TB, A)  unsplit action

    # Fused prenet (scale | translation on the output axis): one matmul pair,
    # bias + ReLU in f32.  concat(se, action_copy) @ W1 == se @ W1_se + a @ W1_ac_pad.
    h = (jnp.dot(se, w1_se_ref[...], preferred_element_type=jnp.float32)
         + jnp.dot(a, w1_ac_ref[...], preferred_element_type=jnp.float32)
         + b1_ref[...])
    h = jnp.maximum(h, 0.0)                # (TB, 2A)

    # Fused block-diagonal second layer; outputs are pre-scattered onto the
    # transform lanes of an A-wide slab (copy lanes exactly 0).
    st = (jnp.dot(h.astype(w2_ref.dtype), w2_ref[...],
                  preferred_element_type=jnp.float32)
          + b2_ref[...])                   # (TB, 2A) = [s_pad | t_pad]
    s_pad = st[:, :A]
    t_pad = st[:, A:]

    # Affine coupling.  On copy lanes s_pad == 0 and t_pad == 0, so
    # t_pad + a * exp(s_pad) == a there: the full action_out in a single store.
    a_f32 = a.astype(jnp.float32)
    out_ref[...] = (t_pad + a_f32 * jnp.exp(s_pad)).astype(out_ref.dtype)

    # log-det: copy lanes contribute 0 to the sum.  (XLU lane reduce, free slot.)
    log_det = jnp.sum(s_pad, axis=-1, keepdims=True)           # (TB, 1)
    lp_out_ref[...] = (lp_ref[...].astype(jnp.float32) - log_det).astype(
        lp_out_ref.dtype)


def _round_up(x, m):
    return ((x + m - 1) // m) * m


def coupling_layer(action, state_embedding, log_pi, params, *, parity="odd",
                   tile_b=1024):
    """Real NVP CouplingLayer forward.

    action:          (B, A)
    state_embedding: (B, 2A)
    log_pi:          (B,)
    params: scale_prenet_w (2A+C, A), scale_prenet_b (A,), scale_net_w (A, A-C),
            scale_net_b (A-C,), and the same four translation_* tensors.
            Weights are stored (in_features, out_features).
    Returns (action_out (B, A), log_pi_out (B,)).
    """
    B, A = action.shape
    E = state_embedding.shape[1]
    assert tile_b % 8 == 0, "tile_b must be a multiple of 8 (sublane tiling)"

    if parity == "odd":
        copy = A // 2
        copy_sl = slice(0, copy)           # lanes of `action` that are copied
        trans_sl = slice(copy, A)          # lanes of `action` that are transformed
    else:
        copy = A - A // 2
        copy_sl = slice(A - copy, A)
        trans_sl = slice(0, A - copy)

    ws1, bs1 = params["scale_prenet_w"], params["scale_prenet_b"]
    ws2, bs2 = params["scale_net_w"], params["scale_net_b"]
    wt1, bt1 = params["translation_prenet_w"], params["translation_prenet_b"]
    wt2, bt2 = params["translation_net_w"], params["translation_net_b"]

    # ---- fuse + pad weights (tiny one-time prep; weights stay VMEM-resident) ----
    # Layer 1: [scale | translation] fused on the output axis.  The action part is
    # scattered onto the copy lanes of the UNSPLIT action (transform rows = 0).
    w1_se = jnp.concatenate([ws1[:E], wt1[:E]], axis=1)                 # (E, 2A)
    w1_ac_rows = jnp.concatenate([ws1[E:], wt1[E:]], axis=1)            # (copy, 2A)
    w1_ac = jnp.zeros((A, 2 * A), w1_ac_rows.dtype).at[copy_sl, :].set(w1_ac_rows)
    b1 = jnp.concatenate([bs1, bt1]).reshape(1, 2 * A).astype(jnp.float32)

    # Layer 2: block-diagonal fused weight; each path's `trans` outputs are
    # scattered onto the transform lanes of an A-wide slab (copy lanes = 0), so the
    # kernel emits the full action_out with no in-kernel slicing / concat / select.
    ws2_pad = jnp.zeros((A, A), ws2.dtype).at[:, trans_sl].set(ws2)
    wt2_pad = jnp.zeros((A, A), wt2.dtype).at[:, trans_sl].set(wt2)
    zA = jnp.zeros((A, A), ws2.dtype)
    w2 = jnp.concatenate(
        [jnp.concatenate([ws2_pad, zA], axis=1),
         jnp.concatenate([zA, wt2_pad], axis=1)], axis=0)               # (2A, 2A)
    bs2_pad = jnp.zeros((A,), jnp.float32).at[trans_sl].set(bs2.astype(jnp.float32))
    bt2_pad = jnp.zeros((A,), jnp.float32).at[trans_sl].set(bt2.astype(jnp.float32))
    b2 = jnp.concatenate([bs2_pad, bt2_pad]).reshape(1, 2 * A)

    lp_2d = log_pi.reshape(B, 1)

    # ---- batch tiling ----
    if B <= 16:
        TB = B                             # single tile; block dims == full dims
    else:
        # >= 2 grid steps so both v7x TensorCores get work; sublane multiple of 8.
        TB = min(tile_b, _round_up(pl.cdiv(B, 2), 8))
    grid = (pl.cdiv(B, TB),)

    row = lambda i: (i, 0)                 # batch-tiled operands
    fixed = lambda i: (0, 0)               # weights: resident across grid steps

    # Advisory cost estimate (3 fused matmuls + elementwise tail).
    flops = 2 * B * (E * 2 * A + A * 2 * A + 2 * A * 2 * A) + 6 * B * A
    bytes_accessed = 4 * (B * (E + 2 * A + 2)
                          + (E + A) * 2 * A + 2 * A * 2 * A + 4 * A)

    kernel = functools.partial(_coupling_kernel, A=A)

    action_out, lp_out = pl.pallas_call(
        kernel,
        out_shape=(
            jax.ShapeDtypeStruct((B, A), action.dtype),
            jax.ShapeDtypeStruct((B, 1), log_pi.dtype),
        ),
        grid=grid,
        in_specs=[
            pl.BlockSpec((TB, E), row),
            pl.BlockSpec((TB, A), row),
            pl.BlockSpec((TB, 1), row),
            # fused weights (constant index map -> loaded once)
            pl.BlockSpec((E, 2 * A), fixed),
            pl.BlockSpec((A, 2 * A), fixed),
            pl.BlockSpec((1, 2 * A), fixed),
            pl.BlockSpec((2 * A, 2 * A), fixed),
            pl.BlockSpec((1, 2 * A), fixed),
        ],
        out_specs=(
            pl.BlockSpec((TB, A), row),
            pl.BlockSpec((TB, 1), row),
        ),
        compiler_params=pltpu.CompilerParams(
            dimension_semantics=("parallel",)),
        cost_estimate=pl.CostEstimate(
            flops=flops,
            transcendentals=B * A,
            bytes_accessed=bytes_accessed),
    )(state_embedding, action, lp_2d,
      w1_se, w1_ac, b1, w2, b2)

    return action_out, lp_out.reshape(B)


def _reference(action, state_embedding, log_pi, params, parity):
    """Pure-JAX reference matching the PyTorch CouplingLayer.forward."""
    A = action.shape[1]
    if parity == "odd":
        copy = A // 2
        a_copy = action[:, :copy]
        a_trans = action[:, copy:]
    else:
        copy = A - A // 2
        a_copy = action[:, A - copy:]
        a_trans = action[:, :A - copy]
    x = jnp.concatenate([state_embedding, a_copy], axis=1)
    h_t = jax.nn.relu(x @ params["translation_prenet_w"] + params["translation_prenet_b"])
    t = h_t @ params["translation_net_w"] + params["translation_net_b"]
    h_s = jax.nn.relu(x @ params["scale_prenet_w"] + params["scale_prenet_b"])
    s = h_s @ params["scale_net_w"] + params["scale_net_b"]
    out_t = t + a_trans * jnp.exp(s)
    if parity == "odd":
        action_out = jnp.concatenate([a_copy, out_t], axis=1)
    else:
        action_out = jnp.concatenate([out_t, a_copy], axis=1)
    return action_out, log_pi - s.sum(axis=1)


if __name__ == "__main__":
    key = jax.random.PRNGKey(0)
    keys = jax.random.split(key, 11)

    # Small shapes consistent with the module: action_size=16, state emb = 2*action_size.
    B, A = 8, 16
    E = 2 * A
    copy = A // 2              # same for odd/even when A is even
    trans = A - copy

    action = jax.random.normal(keys[0], (B, A), dtype=jnp.float32)
    state_embedding = jax.random.normal(keys[1], (B, E), dtype=jnp.float32)
    log_pi = jax.random.normal(keys[2], (B,), dtype=jnp.float32)

    def w(k, shape, scale=0.1):
        return scale * jax.random.normal(k, shape, dtype=jnp.float32)

    params = {
        "scale_prenet_w": w(keys[3], (E + copy, A)),
        "scale_prenet_b": w(keys[4], (A,)),
        "scale_net_w": w(keys[5], (A, trans)),
        "scale_net_b": w(keys[6], (trans,)),
        "translation_prenet_w": w(keys[7], (E + copy, A)),
        "translation_prenet_b": w(keys[8], (A,)),
        "translation_net_w": w(keys[9], (A, trans)),
        "translation_net_b": w(keys[10], (trans,)),
    }

    ok = True
    for parity in ("odd", "even"):
        act_out, lp_out = coupling_layer(action, state_embedding, log_pi, params,
                                         parity=parity)
        jax.block_until_ready((act_out, lp_out))
        ref_act, ref_lp = _reference(action, state_embedding, log_pi, params, parity)
        ok &= bool(jnp.allclose(act_out, ref_act, atol=1e-3, rtol=1e-3))
        ok &= bool(jnp.allclose(lp_out, ref_lp, atol=1e-3, rtol=1e-3))

    assert ok, "mismatch vs reference"
    print("KERNEL_OK")
</pallas_src>

<mosaic_0001>
module attributes {stable_mosaic.version = 11 : i64} {
  func.func @_coupling_kernel(%arg0: i32, %arg1: memref<8x32xf32, #tpu.memory_space<vmem>>, %arg2: memref<8x16xf32, #tpu.memory_space<vmem>>, %arg3: memref<8x1xf32, #tpu.memory_space<vmem>>, %arg4: memref<32x32xf32, #tpu.memory_space<vmem>>, %arg5: memref<16x32xf32, #tpu.memory_space<vmem>>, %arg6: memref<1x32xf32, #tpu.memory_space<vmem>>, %arg7: memref<32x32xf32, #tpu.memory_space<vmem>>, %arg8: memref<1x32xf32, #tpu.memory_space<vmem>>, %arg9: memref<8x16xf32, #tpu.memory_space<vmem>>, %arg10: memref<8x1xf32, #tpu.memory_space<vmem>>) attributes {dimension_semantics = [#tpu.dimension_semantics<parallel>], iteration_bounds = array<i64: 1>, scalar_prefetch = 0 : i64, scratch_operands = 0 : i64, tpu.core_type = #tpu.core_type<tc>, window_params = [{transform_indices = @transform_0, window_bounds = array<i64: 8, 32>}, {transform_indices = @transform_1, window_bounds = array<i64: 8, 16>}, {transform_indices = @transform_2, window_bounds = array<i64: 8, 1>}, {pipeline_mode = #tpu.pipeline_mode<synchronous>, transform_indices = @transform_3, window_bounds = array<i64: 32, 32>}, {pipeline_mode = #tpu.pipeline_mode<synchronous>, transform_indices = @transform_4, window_bounds = array<i64: 16, 32>}, {pipeline_mode = #tpu.pipeline_mode<synchronous>, transform_indices = @transform_5, window_bounds = array<i64: 1, 32>}, {pipeline_mode = #tpu.pipeline_mode<synchronous>, transform_indices = @transform_6, window_bounds = array<i64: 32, 32>}, {pipeline_mode = #tpu.pipeline_mode<synchronous>, transform_indices = @transform_7, window_bounds = array<i64: 1, 32>}, {transform_indices = @transform_8, window_bounds = array<i64: 8, 16>}, {transform_indices = @transform_9, window_bounds = array<i64: 8, 1>}]} {
    %c0 = arith.constant 0 : index
    %c0_0 = arith.constant 0 : index
    %0 = vector.load %arg1[%c0, %c0_0] : memref<8x32xf32, #tpu.memory_space<vmem>>, vector<8x32xf32>
    %c0_1 = arith.constant 0 : index
    %c0_2 = arith.constant 0 : index
    %1 = vector.load %arg2[%c0_1, %c0_2] : memref<8x16xf32, #tpu.memory_space<vmem>>, vector<8x16xf32>
    %c0_3 = arith.constant 0 : index
    %c0_4 = arith.constant 0 : index
    %2 = vector.load %arg4[%c0_3, %c0_4] : memref<32x32xf32, #tpu.memory_space<vmem>>, vector<32x32xf32>
    %cst = arith.constant dense<0.000000e+00> : vector<8x32xf32>
    %3 = tpu.matmul %0, %2, %cst {dimension_numbers = #tpu.dot_dimension_numbers<[1], [0], [0], [1], [0, 0, 1, 1], [], []>} : vector<8x32xf32>, vector<32x32xf32>, vector<8x32xf32> -> vector<8x32xf32>
    %c0_5 = arith.constant 0 : index
    %c0_6 = arith.constant 0 : index
    %4 = vector.load %arg5[%c0_5, %c0_6] : memref<16x32xf32, #tpu.memory_space<vmem>>, vector<16x32xf32>
    %cst_7 = arith.constant dense<0.000000e+00> : vector<8x32xf32>
    %5 = tpu.matmul %1, %4, %cst_7 {dimension_numbers = #tpu.dot_dimension_numbers<[1], [0], [0], [1], [0, 0, 1, 1], [], []>} : vector<8x16xf32>, vector<16x32xf32>, vector<8x32xf32> -> vector<8x32xf32>
    %6 = arith.addf %3, %5 : vector<8x32xf32>
    %c0_8 = arith.constant 0 : index
    %c0_9 = arith.constant 0 : index
    %7 = vector.load %arg6[%c0_8, %c0_9] : memref<1x32xf32, #tpu.memory_space<vmem>>, vector<1x32xf32>
    %8 = vector.broadcast %7 : vector<1x32xf32> to vector<8x32xf32>
    %9 = arith.addf %6, %8 : vector<8x32xf32>
    %cst_10 = arith.constant 0.000000e+00 : f32
    %10 = vector.broadcast %cst_10 : f32 to vector<8x32xf32>
    %11 = arith.maximumf %9, %10 : vector<8x32xf32>
    %c0_11 = arith.constant 0 : index
    %c0_12 = arith.constant 0 : index
    %12 = vector.load %arg7[%c0_11, %c0_12] : memref<32x32xf32, #tpu.memory_space<vmem>>, vector<32x32xf32>
    %cst_13 = arith.constant dense<0.000000e+00> : vector<8x32xf32>
    %13 = tpu.matmul %11, %12, %cst_13 {dimension_numbers = #tpu.dot_dimension_numbers<[1], [0], [0], [1], [0, 0, 1, 1], [], []>} : vector<8x32xf32>, vector<32x32xf32>, vector<8x32xf32> -> vector<8x32xf32>
    %c0_14 = arith.constant 0 : index
    %c0_15 = arith.constant 0 : index
    %14 = vector.load %arg8[%c0_14, %c0_15] : memref<1x32xf32, #tpu.memory_space<vmem>>, vector<1x32xf32>
    %15 = vector.broadcast %14 : vector<1x32xf32> to vector<8x32xf32>
    %16 = arith.addf %13, %15 : vector<8x32xf32>
    %17 = vector.extract_strided_slice %16 {offsets = [0, 0], sizes = [8, 16], strides = [1, 1]} : vector<8x32xf32> to vector<8x16xf32>
    %18 = vector.extract_strided_slice %16 {offsets = [0, 16], sizes = [8, 16], strides = [1, 1]} : vector<8x32xf32> to vector<8x16xf32>
    %19 = math.exp %17 : vector<8x16xf32>
    %20 = arith.mulf %1, %19 : vector<8x16xf32>
    %21 = arith.addf %18, %20 : vector<8x16xf32>
    %c0_16 = arith.constant 0 : index
    %c0_17 = arith.constant 0 : index
    %22 = vector.load %arg9[%c0_16, %c0_17] : memref<8x16xf32, #tpu.memory_space<vmem>>, vector<8x16xf32>
    tpu.vector_store %arg9[%c0_16, %c0_17], %21 {strides = array<i32>} : memref<8x16xf32, #tpu.memory_space<vmem>>, vector<8x16xf32>,
    %cst_18 = arith.constant dense<0.000000e+00> : vector<8xf32>
    %23 = vector.multi_reduction <add>, %17, %cst_18 [1] : vector<8x16xf32> to vector<8xf32>
    %24 = vector.shape_cast %23 : vector<8xf32> to vector<8x1xf32>
    %c0_19 = arith.constant 0 : index
    %c0_20 = arith.constant 0 : index
    %25 = vector.load %arg3[%c0_19, %c0_20] : memref<8x1xf32, #tpu.memory_space<vmem>>, vector<8x1xf32>
    %26 = arith.subf %25, %24 : vector<8x1xf32>
    %c0_21 = arith.constant 0 : index
    %c0_22 = arith.constant 0 : index
    %27 = vector.load %arg10[%c0_21, %c0_22] : memref<8x1xf32, #tpu.memory_space<vmem>>, vector<8x1xf32>
    tpu.vector_store %arg10[%c0_21, %c0_22], %26 {strides = array<i32>} : memref<8x1xf32, #tpu.memory_space<vmem>>, vector<8x1xf32>,
    return
  }
  func.func @transform_0(%arg0: i32) -> (i32, i32) {
    %c0_i32 = arith.constant 0 : i32
    %c0_i32_0 = arith.constant 0 : i32
    return %arg0, %c0_i32 : i32, i32
  }
  func.func @transform_1(%arg0: i32) -> (i32, i32) {
    %c0_i32 = arith.constant 0 : i32
    %c0_i32_0 = arith.constant 0 : i32
    return %arg0, %c0_i32 : i32, i32
  }
  func.func @transform_2(%arg0: i32) -> (i32, i32) {
    %c0_i32 = arith.constant 0 : i32
    %c0_i32_0 = arith.constant 0 : i32
    return %arg0, %c0_i32 : i32, i32
  }
  func.func @transform_3(%arg0: i32) -> (i32, i32) {
    %c0_i32 = arith.constant 0 : i32
    %c0_i32_0 = arith.constant 0 : i32
    %c0_i32_1 = arith.constant 0 : i32
    return %c0_i32, %c0_i32_0 : i32, i32
  }
  func.func @transform_4(%arg0: i32) -> (i32, i32) {
    %c0_i32 = arith.constant 0 : i32
    %c0_i32_0 = arith.constant 0 : i32
    %c0_i32_1 = arith.constant 0 : i32
    return %c0_i32, %c0_i32_0 : i32, i32
  }
  func.func @transform_5(%arg0: i32) -> (i32, i32) {
    %c0_i32 = arith.constant 0 : i32
    %c0_i32_0 = arith.constant 0 : i32
    %c0_i32_1 = arith.constant 0 : i32
    return %c0_i32, %c0_i32_0 : i32, i32
  }
  func.func @transform_6(%arg0: i32) -> (i32, i32) {
    %c0_i32 = arith.constant 0 : i32
    %c0_i32_0 = arith.constant 0 : i32
    %c0_i32_1 = arith.constant 0 : i32
    return %c0_i32, %c0_i32_0 : i32, i32
  }
  func.func @transform_7(%arg0: i32) -> (i32, i32) {
    %c0_i32 = arith.constant 0 : i32
    %c0_i32_0 = arith.constant 0 : i32
    %c0_i32_1 = arith.constant 0 : i32
    return %c0_i32, %c0_i32_0 : i32, i32
  }
  func.func @transform_8(%arg0: i32) -> (i32, i32) {
    %c0_i32 = arith.constant 0 : i32
    %c0_i32_0 = arith.constant 0 : i32
    return %arg0, %c0_i32 : i32, i32
  }
  func.func @transform_9(%arg0: i32) -> (i32, i32) {
    %c0_i32 = arith.constant 0 : i32
    %c0_i32_0 = arith.constant 0 : i32
    return %arg0, %c0_i32 : i32, i32
  }
}

</mosaic_0001>

<llo_original>
// kernel: tpu_custom_call.1
$region0: #{tpu_custom_call.1}
  #allocation0 [shape = 'u32[]', space=smem, size = 0x4, offset = 0x4, fixed_abs, tag = 'smem constant byte address 0x4 - core index']
  #allocation1 [shape = 'u32[144,128]{1,0:T(1,128)}', space=vmem, size = 0x12000, scoped, tag = 'internal scratch']
  %s0 = inlined_call_operand.hbm [shape: f32[8,32], index: 0, kind: input, shape index: {}]
  %s1 = inlined_call_operand.hbm [shape: f32[8,16], index: 1, kind: input, shape index: {}]
  %s2 = inlined_call_operand.vmem [shape: f32[8,1], index: 2, kind: input, shape index: {}]
  %s3 = inlined_call_operand.hbm [shape: f32[32,32], index: 3, kind: input, shape index: {}]
  %s4 = inlined_call_operand.vmem [shape: f32[16,32], index: 4, kind: input, shape index: {}]
  %s5 = inlined_call_operand.vmem [shape: f32[1,32], index: 5, kind: input, shape index: {}]
  %s6 = inlined_call_operand.hbm [shape: f32[32,32], index: 6, kind: input, shape index: {}]
  %s7 = inlined_call_operand.vmem [shape: f32[1,32], index: 7, kind: input, shape index: {}]
  %s8 = inlined_call_operand.hbm [shape: f32[8,16], index: 8, kind: output, shape index: {0}]
  %s9 = inlined_call_operand.vmem [shape: f32[8,1], index: 9, kind: output, shape index: {1}]
  %10 = xla_tuple %s8, %s9
  %s11 = sld [smem:[#allocation0]]
  $region66: #{tpu_custom_call.1} parent=0
    _
  %s13 = ssub.s32 1, %s11
  %s14 = scalar_select 0, %s13, %s11
  $region1: #{tpu_custom_call.1} parent=0
    #allocation2 [shape = 'u8[4096]{0}', space=vmem, size = 0x1000, scoped, tag = 'input window, operand 0, single buffered']
    #allocation3 [shape = 's32[1]{0}', space=sflag, size = 0x4, scoped, tag = 'scoped memory for tpu_custom_call.1']
    #allocation4 [shape = 's32[1]{0}', space=sflag, size = 0x4, scoped, tag = 'scoped memory for tpu_custom_call.1']
    #allocation5 [shape = 'u8[4096]{0}', space=vmem, size = 0x1000, scoped, tag = 'input window, operand 1, single buffered']
    #allocation6 [shape = 's32[1]{0}', space=sflag, size = 0x4, scoped, tag = 'scoped memory for tpu_custom_call.1']
    #allocation7 [shape = 'u8[16384]{0}', space=vmem, size = 0x4000, scoped, tag = 'input window, operand 3, single buffered']
    #allocation8 [shape = 'u8[16384]{0}', space=vmem, size = 0x4000, scoped, tag = 'input window, operand 6, single buffered']
    #allocation9 [shape = 's32[1]{0}', space=sflag, size = 0x4, scoped, tag = 'scoped memory for tpu_custom_call.1']
    #allocation10 [shape = 'u8[4096]{0}', space=vmem, size = 0x1000, scoped, tag = 'output window, operand 0, single buffered']
    %15 = vsyncpa [#allocation3], 0
    %16 = vsyncpa [#allocation6], 0
    %17 = vsyncpa [#allocation9], 0
    %18 = vsyncpa [#allocation4], 0
    // Predicated region
    $region2: #{tpu_custom_call.1} parent=1 // pred_check
      _
    $region3: #{tpu_custom_call.1} parent=1 // pred_check_branch
      %20 = sbr.rel (0) target = $region5
    $region4: #{tpu_custom_call.1} parent=1 // pred_region
      %s22 = ssub.s32 128, 128
      %23 = vsyncadd [#allocation3], %s22
      %s25 = sshll.u32 [#allocation2], 4
      %s26 = int_to_ptr.vmem [resolvable:$true] %s25
      %28 = dma.hbm_to_vmem [thread:$0]  %s0, 128, %s26, [#allocation3]
    $region5: #{tpu_custom_call.1} parent=1 // pred_fallthru
      _
    // Predicated region
    $region6: #{tpu_custom_call.1} parent=1 // pred_check
      _
    $region7: #{tpu_custom_call.1} parent=1 // pred_check_branch
      %30 = sbr.rel (0) target = $region9
    $region8: #{tpu_custom_call.1} parent=1 // pred_region
      %s32 = ssub.s32 128, 128
      %33 = vsyncadd [#allocation6], %s32
      %s35 = sshll.u32 [#allocation5], 4
      %s36 = int_to_ptr.vmem [resolvable:$true] %s35
      %38 = dma.hbm_to_vmem [thread:$0]  %s1, 128, %s36, [#allocation6]
    $region9: #{tpu_custom_call.1} parent=1 // pred_fallthru
      _
    // Predicated region
    $region10: #{tpu_custom_call.1} parent=1 // pred_check
      _
    $region11: #{tpu_custom_call.1} parent=1 // pred_check_branch
      %40 = sbr.rel (0) target = $region13
    $region12: #{tpu_custom_call.1} parent=1 // pred_region
      _
    $region13: #{tpu_custom_call.1} parent=1 // pred_fallthru
      _
    // Predicated region
    $region14: #{tpu_custom_call.1} parent=1 // pred_check
      _
    $region15: #{tpu_custom_call.1} parent=1 // pred_check_branch
      %42 = sbr.rel (0) target = $region17
    $region16: #{tpu_custom_call.1} parent=1 // pred_region
      %s44 = ssub.s32 512, 512
      %45 = vsyncadd [#allocation6], %s44
      %s46 = sshll.u32 [#allocation7], 4
      %s47 = int_to_ptr.vmem [resolvable:$true] %s46
      %52 = dma.hbm_to_vmem [thread:$0]  %s3, 512, %s47, [#allocation6], 128, 128, 8
    $region17: #{tpu_custom_call.1} parent=1 // pred_fallthru
      _
    // Predicated region
    $region18: #{tpu_custom_call.1} parent=1 // pred_check
      _
    $region19: #{tpu_custom_call.1} parent=1 // pred_check_branch
      %54 = sbr.rel (0) target = $region21
    $region20: #{tpu_custom_call.1} parent=1 // pred_region
      _
    $region21: #{tpu_custom_call.1} parent=1 // pred_fallthru
      _
    // Predicated region
    $region22: #{tpu_custom_call.1} parent=1 // pred_check
      _
    $region23: #{tpu_custom_call.1} parent=1 // pred_check_branch
      %56 = sbr.rel (0) target = $region25
    $region24: #{tpu_custom_call.1} parent=1 // pred_region
      _
    $region25: #{tpu_custom_call.1} parent=1 // pred_fallthru
      _
    // Predicated region
    $region26: #{tpu_custom_call.1} parent=1 // pred_check
      _
    $region27: #{tpu_custom_call.1} parent=1 // pred_check_branch
      %58 = sbr.rel (0) target = $region29
    $region28: #{tpu_custom_call.1} parent=1 // pred_region
      %s60 = ssub.s32 512, 512
      %61 = vsyncadd [#allocation9], %s60
      %s62 = sshll.u32 [#allocation8], 4
      %s63 = int_to_ptr.vmem [resolvable:$true] %s62
      %68 = dma.hbm_to_vmem [thread:$0]  %s6, 512, %s63, [#allocation9], 128, 128, 8
    $region29: #{tpu_custom_call.1} parent=1 // pred_fallthru
      _
    // Predicated region
    $region30: #{tpu_custom_call.1} parent=1 // pred_check
      _
    $region31: #{tpu_custom_call.1} parent=1 // pred_check_branch
      %70 = sbr.rel (0) target = $region33
    $region32: #{tpu_custom_call.1} parent=1 // pred_region
      _
    $region33: #{tpu_custom_call.1} parent=1 // pred_fallthru
      _
    // Predicated region
    $region34: #{tpu_custom_call.1} parent=1 // pred_check
      _
    $region35: #{tpu_custom_call.1} parent=1 // pred_check_branch
      %72 = sbr.rel (0) target = $region37
    $region36: #{tpu_custom_call.1} parent=1 // pred_region
      %73 = dma.done [#allocation3], 128
    $region37: #{tpu_custom_call.1} parent=1 // pred_fallthru
      _
    // Predicated region
    $region38: #{tpu_custom_call.1} parent=1 // pred_check
      _
    $region39: #{tpu_custom_call.1} parent=1 // pred_check_branch
      %75 = sbr.rel (0) target = $region41
    $region40: #{tpu_custom_call.1} parent=1 // pred_region
      %76 = dma.done [#allocation6], 128
    $region41: #{tpu_custom_call.1} parent=1 // pred_fallthru
      _
    // Predicated region
    $region42: #{tpu_custom_call.1} parent=1 // pred_check
      _
    $region43: #{tpu_custom_call.1} parent=1 // pred_check_branch
      %78 = sbr.rel (0) target = $region45
    $region44: #{tpu_custom_call.1} parent=1 // pred_region
      %79 = dma.done [#allocation6], 512
    $region45: #{tpu_custom_call.1} parent=1 // pred_fallthru
      _
    // Predicated region
    $region46: #{tpu_custom_call.1} parent=1 // pred_check
      _
    $region47: #{tpu_custom_call.1} parent=1 // pred_check_branch
      %81 = sbr.rel (0) target = $region49
    $region48: #{tpu_custom_call.1} parent=1 // pred_region
      %82 = dma.done [#allocation9], 512
    $region49: #{tpu_custom_call.1} parent=1 // pred_fallthru
      _
    %v83 = vld [vmem:[#allocation2] sm:$0xff]
    %v84 = vld [vmem:[#allocation5] sm:$0xff]
    %v85 = vld [vmem:[#allocation7] sm:$0xff]
    %v86 = vld [vmem:[#allocation7 + $0x8] sm:$0xff]
    %v87 = vld [vmem:[#allocation7 + $0x10] sm:$0xff]
    %v88 = vld [vmem:[#allocation7 + $0x18] sm:$0xff]
    %v89 = vld [vmem:[%s4] sm:$0xff]
    %v90 = vld [vmem:[%s4 + $0x8] sm:$0xff]
    %vm91 = vcmask 130048
    %v93 = vsel %vm91, %v84, 0
    %95 = vmatprep.subr.mxu0 0.0
    %96 = vmatpush1.msra.mxu0 0.0
    %97 = vmatprep.subr.mxu0 0.0
    %98 = vmatpush1.msra.mxu0 0.0
    %99 = vmatprep.subr.mxu0 0.0
    %100 = vmatpush1.msra.mxu0 0.0
    %101 = vmatprep.subr.mxu0 0.0
    %102 = vmatpush1.msra.mxu0 0.0
    %103 = vmatprep.subr.mxu0 0.0
    %104 = vmatpush1.msra.mxu0 0.0
    %105 = vmatprep.subr.mxu0 0.0
    %106 = vmatpush1.msra.mxu0 0.0
    %107 = vmatprep.subr.mxu0 0.0
    %108 = vmatpush1.msra.mxu0 0.0
    %109 = vmatprep.subr.mxu0 0.0
    %110 = vmatpush1.msra.mxu0 0.0
    %111 = vmatprep.subr.mxu0 0.0
    %112 = vmatpush1.msra.mxu0 0.0
    %113 = vmatprep.subr.mxu0 0.0
    %114 = vmatpush1.msra.mxu0 0.0
    %115 = vmatprep.subr.mxu0 0.0
    %116 = vmatpush1.msra.mxu0 0.0
    %117 = vmatprep.subr.mxu0 0.0
    %118 = vmatpush1.msra.mxu0 0.0
    %119 = vmatprep.subr.mxu0 0.0
    %120 = vmatpush1.msra.mxu0 0.0
    %121 = vmatprep.subr.mxu0 0.0
    %122 = vmatpush1.msra.mxu0 0.0
    %123 = vmatprep.subr.mxu0 0.0
    %124 = vmatpush1.msra.mxu0 %v90
    %125 = vmatprep.subr.mxu0 0.0
    %126 = vmatpush1.msra.mxu0 %v89
    %127 = vmatprep.subr.mxu0 0.0
    %128 = vmatpush2.msra.mxu0 0.0
    %129 = vmatprep.subr.mxu0 0.0
    %130 = vmatpush2.msra.mxu0 0.0
    %131 = vmatprep.subr.mxu0 0.0
    %132 = vmatpush2.msra.mxu0 0.0
    %133 = vmatprep.subr.mxu0 0.0
    %134 = vmatpush2.msra.mxu0 0.0
    %135 = vmatprep.subr.mxu0 0.0
    %136 = vmatpush2.msra.mxu0 0.0
    %137 = vmatprep.subr.mxu0 0.0
    %138 = vmatpush2.msra.mxu0 0.0
    %139 = vmatprep.subr.mxu0 0.0
    %140 = vmatpush2.msra.mxu0 0.0
    %141 = vmatprep.subr.mxu0 0.0
    %142 = vmatpush2.msra.mxu0 0.0
    %143 = vmatprep.subr.mxu0 0.0
    %144 = vmatpush2.msra.mxu0 0.0
    %145 = vmatprep.subr.mxu0 0.0
    %146 = vmatpush2.msra.mxu0 0.0
    %147 = vmatprep.subr.mxu0 0.0
    %148 = vmatpush2.msra.mxu0 0.0
    %149 = vmatprep.subr.mxu0 0.0
    %150 = vmatpush2.msra.mxu0 0.0
    %151 = vmatprep.subr.mxu0 0.0
    %152 = vmatpush2.msra.mxu0 0.0
    %153 = vmatprep.subr.mxu0 0.0
    %154 = vmatpush2.msra.mxu0 0.0
    %155 = vmatprep.subr.mxu0 0.0
    %156 = vmatpush2.msra.mxu0 0.0
    %157 = vmatprep.subr.mxu0 0.0
    %158 = vmatpush2.msra.mxu0 0.0
    %159 = vmatprep.mubr.f32.mxu0 0.0
    %160 = vmatmul.mubr.f32.gmra.mxu0 %v93
    %v161 = vpop.f32.mrf.mxu0
    %v162 = vadd.f32 0.0, %v161
    %v163 = vpop.f32.mrf.mxu0
    %164 = vdwg.mxu0
    %vm165 = vcmask 261120
    %v167 = vsel %vm165, %v83, 0
    %169 = vmatprep.subr.mxu0 0.0
    %170 = vmatpush1.msra.mxu0 0.0
    %171 = vmatprep.subr.mxu0 0.0
    %172 = vmatpush1.msra.mxu0 0.0
    %173 = vmatprep.subr.mxu0 0.0
    %174 = vmatpush1.msra.mxu0 0.0
    %175 = vmatprep.subr.mxu0 0.0
    %176 = vmatpush1.msra.mxu0 0.0
    %177 = vmatprep.subr.mxu0 0.0
    %178 = vmatpush1.msra.mxu0 0.0
    %179 = vmatprep.subr.mxu0 0.0
    %180 = vmatpush1.msra.mxu0 0.0
    %181 = vmatprep.subr.mxu0 0.0
    %182 = vmatpush1.msra.mxu0 0.0
    %183 = vmatprep.subr.mxu0 0.0
    %184 = vmatpush1.msra.mxu0 0.0
    %185 = vmatprep.subr.mxu0 0.0
    %186 = vmatpush1.msra.mxu0 0.0
    %187 = vmatprep.subr.mxu0 0.0
    %188 = vmatpush1.msra.mxu0 0.0
    %189 = vmatprep.subr.mxu0 0.0
    %190 = vmatpush1.msra.mxu0 0.0
    %191 = vmatprep.subr.mxu0 0.0
    %192 = vmatpush1.msra.mxu0 0.0
    %193 = vmatprep.subr.mxu0 0.0
    %194 = vmatpush1.msra.mxu0 %v88
    %195 = vmatprep.subr.mxu0 0.0
    %196 = vmatpush1.msra.mxu0 %v87
    %197 = vmatprep.subr.mxu0 0.0
    %198 = vmatpush1.msra.mxu0 %v86
    %199 = vmatprep.subr.mxu0 0.0
    %200 = vmatpush1.msra.mxu0 %v85
    %201 = vmatprep.subr.mxu0 0.0
    %202 = vmatpush2.msra.mxu0 0.0
    %203 = vmatprep.subr.mxu0 0.0
    %204 = vmatpush2.msra.mxu0 0.0
    %205 = vmatprep.subr.mxu0 0.0
    %206 = vmatpush2.msra.mxu0 0.0
    %207 = vmatprep.subr.mxu0 0.0
    %208 = vmatpush2.msra.mxu0 0.0
    %209 = vmatprep.subr.mxu0 0.0
    %210 = vmatpush2.msra.mxu0 0.0
    %211 = vmatprep.subr.mxu0 0.0
    %212 = vmatpush2.msra.mxu0 0.0
    %213 = vmatprep.subr.mxu0 0.0
    %214 = vmatpush2.msra.mxu0 0.0
    %215 = vmatprep.subr.mxu0 0.0
    %216 = vmatpush2.msra.mxu0 0.0
    %217 = vmatprep.subr.mxu0 0.0
    %218 = vmatpush2.msra.mxu0 0.0
    %219 = vmatprep.subr.mxu0 0.0
    %220 = vmatpush2.msra.mxu0 0.0
    %221 = vmatprep.subr.mxu0 0.0
    %222 = vmatpush2.msra.mxu0 0.0
    %223 = vmatprep.subr.mxu0 0.0
    %224 = vmatpush2.msra.mxu0 0.0
    %225 = vmatprep.subr.mxu0 0.0
    %226 = vmatpush2.msra.mxu0 0.0
    %227 = vmatprep.subr.mxu0 0.0
    %228 = vmatpush2.msra.mxu0 0.0
    %229 = vmatprep.subr.mxu0 0.0
    %230 = vmatpush2.msra.mxu0 0.0
    %231 = vmatprep.subr.mxu0 0.0
    %232 = vmatpush2.msra.mxu0 0.0
    %233 = vmatprep.mubr.f32.mxu0 0.0
    %234 = vmatmul.mubr.f32.gmra.mxu0 %v167
    %v235 = vpop.f32.mrf.mxu0
    %v236 = vadd.f32 %v162, %v235
    %v237 = vpop.f32.mrf.mxu0
    %238 = vdwg.mxu0
    %v239 = vld [vmem:[%s5] sm:$0x1]
    %v241 = vlaneseq
    %v242 = vshrl.u32 %v241, 7
    %v243 = vsub.s32 0, %v242
    %v244 = vrot.slane %v239, %v243
    %v246 = vadd.f32 %v236, %v244
    %v247 = vmax.f32 %v246, 0.0
    %v248 = vld [vmem:[#allocation8] sm:$0xff]
    %v249 = vld [vmem:[#allocation8 + $0x8] sm:$0xff]
    %v250 = vld [vmem:[#allocation8 + $0x10] sm:$0xff]
    %v251 = vld [vmem:[#allocation8 + $0x18] sm:$0xff]
    %v252 = vld [vmem:[%s7] sm:$0x1]
    %v254 = vlaneseq
    %v255 = vshrl.u32 %v254, 7
    %v256 = vsub.s32 0, %v255
    %v257 = vrot.slane %v252, %v256
    %v260 = vsel %vm165, %v247, 0
    %262 = vmatprep.subr.mxu0 0.0
    %263 = vmatpush1.msra.mxu0 0.0
    %264 = vmatprep.subr.mxu0 0.0
    %265 = vmatpush1.msra.mxu0 0.0
    %266 = vmatprep.subr.mxu0 0.0
    %267 = vmatpush1.msra.mxu0 0.0
    %268 = vmatprep.subr.mxu0 0.0
    %269 = vmatpush1.msra.mxu0 0.0
    %270 = vmatprep.subr.mxu0 0.0
    %271 = vmatpush1.msra.mxu0 0.0
    %272 = vmatprep.subr.mxu0 0.0
    %273 = vmatpush1.msra.mxu0 0.0
    %274 = vmatprep.subr.mxu0 0.0
    %275 = vmatpush1.msra.mxu0 0.0
    %276 = vmatprep.subr.mxu0 0.0
    %277 = vmatpush1.msra.mxu0 0.0
    %278 = vmatprep.subr.mxu0 0.0
    %279 = vmatpush1.msra.mxu0 0.0
    %280 = vmatprep.subr.mxu0 0.0
    %281 = vmatpush1.msra.mxu0 0.0
    %282 = vmatprep.subr.mxu0 0.0
    %283 = vmatpush1.msra.mxu0 0.0
    %284 = vmatprep.subr.mxu0 0.0
    %285 = vmatpush1.msra.mxu0 0.0
    %286 = vmatprep.subr.mxu0 0.0
    %287 = vmatpush1.msra.mxu0 %v251
    %288 = vmatprep.subr.mxu0 0.0
    %289 = vmatpush1.msra.mxu0 %v250
    %290 = vmatprep.subr.mxu0 0.0
    %291 = vmatpush1.msra.mxu0 %v249
    %292 = vmatprep.subr.mxu0 0.0
    %293 = vmatpush1.msra.mxu0 %v248
    %294 = vmatprep.subr.mxu0 0.0
    %295 = vmatpush2.msra.mxu0 0.0
    %296 = vmatprep.subr.mxu0 0.0
    %297 = vmatpush2.msra.mxu0 0.0
    %298 = vmatprep.subr.mxu0 0.0
    %299 = vmatpush2.msra.mxu0 0.0
    %300 = vmatprep.subr.mxu0 0.0
    %301 = vmatpush2.msra.mxu0 0.0
    %302 = vmatprep.subr.mxu0 0.0
    %303 = vmatpush2.msra.mxu0 0.0
    %304 = vmatprep.subr.mxu0 0.0
    %305 = vmatpush2.msra.mxu0 0.0
    %306 = vmatprep.subr.mxu0 0.0
    %307 = vmatpush2.msra.mxu0 0.0
    %308 = vmatprep.subr.mxu0 0.0
    %309 = vmatpush2.msra.mxu0 0.0
    %310 = vmatprep.subr.mxu0 0.0
    %311 = vmatpush2.msra.mxu0 0.0
    %312 = vmatprep.subr.mxu0 0.0
    %313 = vmatpush2.msra.mxu0 0.0
    %314 = vmatprep.subr.mxu0 0.0
    %315 = vmatpush2.msra.mxu0 0.0
    %316 = vmatprep.subr.mxu0 0.0
    %317 = vmatpush2.msra.mxu0 0.0
    %318 = vmatprep.subr.mxu0 0.0
    %319 = vmatpush2.msra.mxu0 0.0
    %320 = vmatprep.subr.mxu0 0.0
    %321 = vmatpush2.msra.mxu0 0.0
    %322 = vmatprep.subr.mxu0 0.0
    %323 = vmatpush2.msra.mxu0 0.0
    %324 = vmatprep.subr.mxu0 0.0
    %325 = vmatpush2.msra.mxu0 0.0
    %326 = vmatprep.mubr.f32.mxu0 0.0
    %327 = vmatmul.mubr.f32.gmra.mxu0 %v260
    %v328 = vpop.f32.mrf.mxu0
    %v329 = vadd.f32 %v257, %v328
    %v330 = vpop.f32.mrf.mxu0
    %331 = vdwg.mxu0
    %v332 = vmul.f32 %v329, 1.442695
    %v333 = vpow.pop %v332
    %v334 = vmul.f32 %v84, %v333
    %336 = vrot.lane.b32.xlu0 %v334, 16
    %v337 = vpop.permute.xlu0 %336
    %v339 = vadd.f32 %v329, %v337
    %341 = vrot.lane.b32.xlu0 %v339, 112
    %v342 = vpop.permute.xlu0 %341
    %344 = vst.msk [vmem:[#allocation10] sm:$0xff] %vm91, %v342
    %v345 = vsel %vm91, %v329, 0.0
    %346 = vadd.xlane.f32.xlu0 %v345
    %v347 = vpop.xlane.xlu0 %346
    %v348 = vld [vmem:[%s2] sm:$0xff]
    %v349 = vsub.f32 %v348, %v347
    %vm350 = vcmask 7168
    %351 = vst.msk [vmem:[%s9] sm:$0xff] %vm350, %v349
    // Predicated region
    $region50: #{tpu_custom_call.1} parent=1 // pred_check
      _
    $region51: #{tpu_custom_call.1} parent=1 // pred_check_branch
      %353 = sbr.rel (0) target = $region53
    $region52: #{tpu_custom_call.1} parent=1 // pred_region
      %s355 = ssub.s32 128, 128
      %356 = vsyncadd [#allocation4], %s355
      %s358 = sshll.u32 [#allocation10], 4
      %s359 = int_to_ptr.vmem [resolvable:$true] %s358
      %361 = dma.vmem_to_hbm [thread:$0]  %s359, 128, %s8, [#allocation4]
    $region53: #{tpu_custom_call.1} parent=1 // pred_fallthru
      _
    // Predicated region
    $region54: #{tpu_custom_call.1} parent=1 // pred_check
      _
    $region55: #{tpu_custom_call.1} parent=1 // pred_check_branch
      %363 = sbr.rel (0) target = $region57
    $region56: #{tpu_custom_call.1} parent=1 // pred_region
      _
    $region57: #{tpu_custom_call.1} parent=1 // pred_fallthru
      _
    // Predicated region
    $region58: #{tpu_custom_call.1} parent=1 // pred_check
      _
    $region59: #{tpu_custom_call.1} parent=1 // pred_check_branch
      %365 = sbr.rel (0) target = $region61
    $region60: #{tpu_custom_call.1} parent=1 // pred_region
      %366 = dma.done [#allocation4], 128
    $region61: #{tpu_custom_call.1} parent=1 // pred_fallthru
      _
    // Predicated region
    $region62: #{tpu_custom_call.1} parent=1 // pred_check
      _
    $region63: #{tpu_custom_call.1} parent=1 // pred_check_branch
      %368 = sbr.rel (0) target = $region65
    $region64: #{tpu_custom_call.1} parent=1 // pred_region
      _
    $region65: #{tpu_custom_call.1} parent=1 // pred_fallthru
      _
    %369 = vsyncpa [#allocation3], 1
    %370 = vsyncpa [#allocation6], 1
    %371 = vsyncpa [#allocation9], 1
    %372 = vsyncpa [#allocation4], 1

</llo_original>
